<compile_context>
chip_gen: v7x
topology: tpu7x:2x2x1
jax: 0.10.0
libtpu: 0.0.40
codegen_flags: <defaults>
</compile_context>

<pallas_src>
import jax
import jax.numpy as jnp
from jax.experimental import pallas as pl
from jax.experimental.pallas import tpu as pltpu

# ---------------- problem config (small, consistent with the module) ---------
N, C_IN, H_IMG, W_IMG = 2, 5, 10, 11   # batch, in-channels, spatial (module implies 5 chans)
C_OUT = 5
K = 3                                   # kernel size
P = 1                                   # conv-transpose padding
PAD_EQ = K - 1 - P                      # equivalent-conv padding (=1); output == input size

HW = H_IMG * W_IMG                      # 110 flattened spatial positions
HWP = 128                               # lane-padded spatial width (one full vreg of lanes)
OFF = 16                                # left zero-margin in the widened input row (>= W_IMG+1)
WIDE = 256                              # widened flat row (OFF + max shift + HWP <= WIDE)
NC = N * C_IN                           # rows per conv tap in the patch slab (10)
NP_ROWS = K * K * NC + 2                # 92 patch rows: 9 taps * 10 + 2 ones rows (bias + pad)


def convt_silu_kernel(w_ref, x_ref, m_ref, o_ref, p_ref):
    """Fused conv-transpose (one im2col matmul) + SiLU.

    w_ref: (N*Cout, NP_ROWS)  bf16 block-diagonal equivalent-conv weights,
                              col NP_ROWS-2 = bias, col NP_ROWS-1 = 0.
    x_ref: (N*Cin, WIDE)      bf16, flattened images at lanes [OFF, OFF+HW), zeros elsewhere.
    m_ref: (K*K, HWP)         bf16 0/1 boundary masks per conv tap.
    o_ref: (N*Cout, HW)       f32 NCHW-flat output.
    p_ref: (NP_ROWS, HWP)     bf16 VMEM scratch: the im2col patch slab.
    """
    # 1) in-kernel im2col: 9 static lane-window reads + boundary masks.
    for kh in range(K):
        for kw in range(K):
            tap = kh * K + kw
            s = (kh - PAD_EQ) * W_IMG + (kw - PAD_EQ)        # flat-HW shift of this tap
            win = x_ref[:, OFF + s: OFF + s + HWP]           # (N*Cin, HWP) bf16
            p_ref[tap * NC:(tap + 1) * NC, :] = win * m_ref[tap:tap + 1, :]
    # bias rows (ones); two rows keep the bf16 sublane packing aligned.
    p_ref[K * K * NC:NP_ROWS, :] = jnp.ones((2, HWP), jnp.bfloat16)

    # 2) one MXU pass for the whole batch (block-diagonal augmented weight).
    acc = jnp.dot(w_ref[...], p_ref[...], preferred_element_type=jnp.float32)  # (N*Cout, HWP)

    # 3) SiLU in f32 (exp on EUP, reciprocal via divide), store the HW valid lanes.
    y = acc * (1.0 / (1.0 + jnp.exp(-acc)))
    o_ref[...] = y[:, :o_ref.shape[1]]


def _build_masks():
    """Constant (K*K, HWP) 0/1 boundary masks (trace-time constant -> folded by XLA)."""
    rows = []
    for kh in range(K):
        for kw in range(K):
            dh, dw = kh - PAD_EQ, kw - PAD_EQ
            row = []
            for p in range(HWP):
                h, w = p // W_IMG, p % W_IMG
                ok = (p < HW) and (0 <= h + dh < H_IMG) and (0 <= w + dw < W_IMG)
                row.append(1.0 if ok else 0.0)
            rows.append(row)
    return jnp.array(rows, dtype=jnp.bfloat16)


def prepare_params(w_ct, b, n_batch):
    """One-time weight prep (outside the hot path).

    w_ct: (Cin, Cout, K, K) PyTorch ConvTranspose2d weight layout; b: (Cout,).
    Returns bf16 block-diagonal augmented weight (n_batch*Cout, K*K*n_batch*Cin + 2):
    column order (tap, image, ci), then bias column, then a zero column.
    """
    # equivalent regular-conv weight: w_eq[kh,kw,ci,co] = w_ct[ci,co,K-1-kh,K-1-kw]
    w_eq = jnp.transpose(jnp.flip(w_ct, axis=(2, 3)), (2, 3, 0, 1))      # (K,K,Cin,Cout)
    w_tap = w_eq.reshape(K * K, C_IN, C_OUT)                             # (tap, ci, co)
    eye = jnp.eye(n_batch, dtype=w_tap.dtype)
    # T[n', co, tap, n, ci] = w_tap[tap, ci, co] * delta(n, n')
    T = jnp.einsum("tic,nm->mctni", w_tap, eye)
    w_mat = T.reshape(n_batch * C_OUT, K * K * n_batch * C_IN)           # (N*Cout, 90)
    bias_col = jnp.tile(b, n_batch).reshape(n_batch * C_OUT, 1)
    zero_col = jnp.zeros_like(bias_col)
    w_aug = jnp.concatenate([w_mat, bias_col, zero_col], axis=1)         # (N*Cout, 92)
    return w_aug.astype(jnp.bfloat16)


@jax.jit
def conv_transpose_silu(x_nchw, w_aug):
    """x_nchw: (N, Cin, H, W) f32;  w_aug: from prepare_params.
    Returns (N, Cout, H, W) f32 matching PyTorch NCHW output."""
    n, cin, h, w = x_nchw.shape
    hw = h * w
    # Flatten to (N*Cin, HW), cast to bf16, and lane-pad into a WIDE zero slab so
    # every conv tap is a static in-kernel lane window (no HBM im2col, no 9x blowup).
    x_flat = x_nchw.reshape(n * cin, hw).astype(jnp.bfloat16)
    x_wide = jnp.pad(x_flat, ((0, 0), (OFF, WIDE - OFF - hw)))
    masks = _build_masks()

    y = pl.pallas_call(
        convt_silu_kernel,
        out_shape=jax.ShapeDtypeStruct((n * C_OUT, hw), jnp.float32),
        # whole problem is a few KB: no grid, full arrays resident in VMEM
        in_specs=[pl.BlockSpec(memory_space=pltpu.MemorySpace.VMEM)] * 3,
        out_specs=pl.BlockSpec(memory_space=pltpu.MemorySpace.VMEM),
        scratch_shapes=[pltpu.VMEM((NP_ROWS, HWP), jnp.bfloat16)],
        cost_estimate=pl.CostEstimate(
            flops=2 * n * C_OUT * NP_ROWS * HWP,
            transcendentals=n * C_OUT * HWP,
            bytes_accessed=(w_aug.size * 2 + (n * cin) * WIDE * 2
                            + (K * K) * HWP * 2 + n * C_OUT * hw * 4)),
    )(w_aug, x_wide, masks)

    # (N*Cout, HW) -> (N, Cout, H, W): contiguous split => metadata-only reshape
    return y.reshape(n, C_OUT, h, w)


def _reference(x_nchw, w_ct, b):
    """Pure-JAX f32 reference (same math, no Pallas)."""
    x = jnp.transpose(x_nchw, (0, 2, 3, 1))
    w_eq = jnp.transpose(jnp.flip(w_ct, axis=(2, 3)), (2, 3, 0, 1))
    x_pad = jnp.pad(x, ((0, 0), (PAD_EQ, PAD_EQ), (PAD_EQ, PAD_EQ), (0, 0)))
    acc = jnp.zeros((x.shape[0], H_IMG, W_IMG, C_OUT), jnp.float32)
    for kh in range(K):
        for kw in range(K):
            acc = acc + jnp.einsum("nhwc,cd->nhwd",
                                   x_pad[:, kh:kh + H_IMG, kw:kw + W_IMG, :], w_eq[kh, kw])
    acc = acc + b
    y = acc * jax.nn.sigmoid(acc)
    return jnp.transpose(y, (0, 3, 1, 2))


if __name__ == "__main__":
    key = jax.random.PRNGKey(0)
    kx, kw_, kb = jax.random.split(key, 3)
    x1 = jax.random.normal(kx, (N, C_IN, H_IMG, W_IMG), dtype=jnp.float32)
    # deterministic params (PyTorch ConvTranspose2d weight layout: Cin, Cout, K, K)
    w_ct = jax.random.normal(kw_, (C_IN, C_OUT, K, K), dtype=jnp.float32) * 0.1
    bias = jax.random.normal(kb, (C_OUT,), dtype=jnp.float32) * 0.1

    w_aug = prepare_params(w_ct, bias, N)           # done once, outside the hot path
    out = jax.block_until_ready(conv_transpose_silu(x1, w_aug))

    # Reference fed the SAME bf16-rounded operands the kernel consumes: bf16 x bf16
    # products are exact in the MXU's f32 accumulation, so the check stays tight.
    x_q = x1.astype(jnp.bfloat16).astype(jnp.float32)
    w_q = w_ct.astype(jnp.bfloat16).astype(jnp.float32)
    b_q = bias.astype(jnp.bfloat16).astype(jnp.float32)
    ref = _reference(x_q, w_q, b_q)

    assert out.shape == (N, C_OUT, H_IMG, W_IMG)
    err = float(jnp.max(jnp.abs(out - ref)))
    assert jnp.allclose(out, ref, atol=2e-3, rtol=2e-3), err
    print("KERNEL_OK")
</pallas_src>

<mosaic_0001>
module attributes {stable_mosaic.version = 11 : i64} {
  func.func @convt_silu_kernel(%arg0: memref<10x92xbf16, #tpu.memory_space<vmem>>, %arg1: memref<10x256xbf16, #tpu.memory_space<vmem>>, %arg2: memref<9x128xbf16, #tpu.memory_space<vmem>>, %arg3: memref<10x110xf32, #tpu.memory_space<vmem>>, %arg4: memref<92x128xbf16, #tpu.memory_space<vmem>>) attributes {dimension_semantics = [], scalar_prefetch = 0 : i64, scratch_operands = 1 : i64, tpu.core_type = #tpu.core_type<tc>} {
    %c0 = arith.constant 0 : index
    %c4 = arith.constant 4 : index
    %0 = vector.load %arg1[%c0, %c4] : memref<10x256xbf16, #tpu.memory_space<vmem>>, vector<10x128xbf16>
    %c0_0 = arith.constant 0 : index
    %c0_1 = arith.constant 0 : index
    %1 = vector.load %arg2[%c0_0, %c0_1] : memref<9x128xbf16, #tpu.memory_space<vmem>>, vector<1x128xbf16>
    %2 = vector.broadcast %1 : vector<1x128xbf16> to vector<10x128xbf16>
    %3 = arith.mulf %0, %2 : vector<10x128xbf16>
    %c0_2 = arith.constant 0 : index
    %c0_3 = arith.constant 0 : index
    %4 = vector.load %arg4[%c0_2, %c0_3] : memref<92x128xbf16, #tpu.memory_space<vmem>>, vector<10x128xbf16>
    tpu.vector_store %arg4[%c0_2, %c0_3], %3 {strides = array<i32>} : memref<92x128xbf16, #tpu.memory_space<vmem>>, vector<10x128xbf16>,
    %c0_4 = arith.constant 0 : index
    %c5 = arith.constant 5 : index
    %5 = vector.load %arg1[%c0_4, %c5] : memref<10x256xbf16, #tpu.memory_space<vmem>>, vector<10x128xbf16>
    %c1 = arith.constant 1 : index
    %c0_5 = arith.constant 0 : index
    %6 = vector.load %arg2[%c1, %c0_5] : memref<9x128xbf16, #tpu.memory_space<vmem>>, vector<1x128xbf16>
    %7 = vector.broadcast %6 : vector<1x128xbf16> to vector<10x128xbf16>
    %8 = arith.mulf %5, %7 : vector<10x128xbf16>
    %c10 = arith.constant 10 : index
    %c0_6 = arith.constant 0 : index
    %9 = vector.load %arg4[%c10, %c0_6] : memref<92x128xbf16, #tpu.memory_space<vmem>>, vector<10x128xbf16>
    tpu.vector_store %arg4[%c10, %c0_6], %8 {strides = array<i32>} : memref<92x128xbf16, #tpu.memory_space<vmem>>, vector<10x128xbf16>,
    %c0_7 = arith.constant 0 : index
    %c6 = arith.constant 6 : index
    %10 = vector.load %arg1[%c0_7, %c6] : memref<10x256xbf16, #tpu.memory_space<vmem>>, vector<10x128xbf16>
    %c2 = arith.constant 2 : index
    %c0_8 = arith.constant 0 : index
    %11 = vector.load %arg2[%c2, %c0_8] : memref<9x128xbf16, #tpu.memory_space<vmem>>, vector<1x128xbf16>
    %12 = vector.broadcast %11 : vector<1x128xbf16> to vector<10x128xbf16>
    %13 = arith.mulf %10, %12 : vector<10x128xbf16>
    %c20 = arith.constant 20 : index
    %c0_9 = arith.constant 0 : index
    %14 = vector.load %arg4[%c20, %c0_9] : memref<92x128xbf16, #tpu.memory_space<vmem>>, vector<10x128xbf16>
    tpu.vector_store %arg4[%c20, %c0_9], %13 {strides = array<i32>} : memref<92x128xbf16, #tpu.memory_space<vmem>>, vector<10x128xbf16>,
    %c0_10 = arith.constant 0 : index
    %c15 = arith.constant 15 : index
    %15 = vector.load %arg1[%c0_10, %c15] : memref<10x256xbf16, #tpu.memory_space<vmem>>, vector<10x128xbf16>
    %c3 = arith.constant 3 : index
    %c0_11 = arith.constant 0 : index
    %16 = vector.load %arg2[%c3, %c0_11] : memref<9x128xbf16, #tpu.memory_space<vmem>>, vector<1x128xbf16>
    %17 = vector.broadcast %16 : vector<1x128xbf16> to vector<10x128xbf16>
    %18 = arith.mulf %15, %17 : vector<10x128xbf16>
    %c30 = arith.constant 30 : index
    %c0_12 = arith.constant 0 : index
    %19 = vector.load %arg4[%c30, %c0_12] : memref<92x128xbf16, #tpu.memory_space<vmem>>, vector<10x128xbf16>
    tpu.vector_store %arg4[%c30, %c0_12], %18 {strides = array<i32>} : memref<92x128xbf16, #tpu.memory_space<vmem>>, vector<10x128xbf16>,
    %c0_13 = arith.constant 0 : index
    %c16 = arith.constant 16 : index
    %20 = vector.load %arg1[%c0_13, %c16] : memref<10x256xbf16, #tpu.memory_space<vmem>>, vector<10x128xbf16>
    %c4_14 = arith.constant 4 : index
    %c0_15 = arith.constant 0 : index
    %21 = vector.load %arg2[%c4_14, %c0_15] : memref<9x128xbf16, #tpu.memory_space<vmem>>, vector<1x128xbf16>
    %22 = vector.broadcast %21 : vector<1x128xbf16> to vector<10x128xbf16>
    %23 = arith.mulf %20, %22 : vector<10x128xbf16>
    %c40 = arith.constant 40 : index
    %c0_16 = arith.constant 0 : index
    %24 = vector.load %arg4[%c40, %c0_16] : memref<92x128xbf16, #tpu.memory_space<vmem>>, vector<10x128xbf16>
    tpu.vector_store %arg4[%c40, %c0_16], %23 {strides = array<i32>} : memref<92x128xbf16, #tpu.memory_space<vmem>>, vector<10x128xbf16>,
    %c0_17 = arith.constant 0 : index
    %c17 = arith.constant 17 : index
    %25 = vector.load %arg1[%c0_17, %c17] : memref<10x256xbf16, #tpu.memory_space<vmem>>, vector<10x128xbf16>
    %c5_18 = arith.constant 5 : index
    %c0_19 = arith.constant 0 : index
    %26 = vector.load %arg2[%c5_18, %c0_19] : memref<9x128xbf16, #tpu.memory_space<vmem>>, vector<1x128xbf16>
    %27 = vector.broadcast %26 : vector<1x128xbf16> to vector<10x128xbf16>
    %28 = arith.mulf %25, %27 : vector<10x128xbf16>
    %c50 = arith.constant 50 : index
    %c0_20 = arith.constant 0 : index
    %29 = vector.load %arg4[%c50, %c0_20] : memref<92x128xbf16, #tpu.memory_space<vmem>>, vector<10x128xbf16>
    tpu.vector_store %arg4[%c50, %c0_20], %28 {strides = array<i32>} : memref<92x128xbf16, #tpu.memory_space<vmem>>, vector<10x128xbf16>,
    %c0_21 = arith.constant 0 : index
    %c26 = arith.constant 26 : index
    %30 = vector.load %arg1[%c0_21, %c26] : memref<10x256xbf16, #tpu.memory_space<vmem>>, vector<10x128xbf16>
    %c6_22 = arith.constant 6 : index
    %c0_23 = arith.constant 0 : index
    %31 = vector.load %arg2[%c6_22, %c0_23] : memref<9x128xbf16, #tpu.memory_space<vmem>>, vector<1x128xbf16>
    %32 = vector.broadcast %31 : vector<1x128xbf16> to vector<10x128xbf16>
    %33 = arith.mulf %30, %32 : vector<10x128xbf16>
    %c60 = arith.constant 60 : index
    %c0_24 = arith.constant 0 : index
    %34 = vector.load %arg4[%c60, %c0_24] : memref<92x128xbf16, #tpu.memory_space<vmem>>, vector<10x128xbf16>
    tpu.vector_store %arg4[%c60, %c0_24], %33 {strides = array<i32>} : memref<92x128xbf16, #tpu.memory_space<vmem>>, vector<10x128xbf16>,
    %c0_25 = arith.constant 0 : index
    %c27 = arith.constant 27 : index
    %35 = vector.load %arg1[%c0_25, %c27] : memref<10x256xbf16, #tpu.memory_space<vmem>>, vector<10x128xbf16>
    %c7 = arith.constant 7 : index
    %c0_26 = arith.constant 0 : index
    %36 = vector.load %arg2[%c7, %c0_26] : memref<9x128xbf16, #tpu.memory_space<vmem>>, vector<1x128xbf16>
    %37 = vector.broadcast %36 : vector<1x128xbf16> to vector<10x128xbf16>
    %38 = arith.mulf %35, %37 : vector<10x128xbf16>
    %c70 = arith.constant 70 : index
    %c0_27 = arith.constant 0 : index
    %39 = vector.load %arg4[%c70, %c0_27] : memref<92x128xbf16, #tpu.memory_space<vmem>>, vector<10x128xbf16>
    tpu.vector_store %arg4[%c70, %c0_27], %38 {strides = array<i32>} : memref<92x128xbf16, #tpu.memory_space<vmem>>, vector<10x128xbf16>,
    %c0_28 = arith.constant 0 : index
    %c28 = arith.constant 28 : index
    %40 = vector.load %arg1[%c0_28, %c28] : memref<10x256xbf16, #tpu.memory_space<vmem>>, vector<10x128xbf16>
    %c8 = arith.constant 8 : index
    %c0_29 = arith.constant 0 : index
    %41 = vector.load %arg2[%c8, %c0_29] : memref<9x128xbf16, #tpu.memory_space<vmem>>, vector<1x128xbf16>
    %42 = vector.broadcast %41 : vector<1x128xbf16> to vector<10x128xbf16>
    %43 = arith.mulf %40, %42 : vector<10x128xbf16>
    %c80 = arith.constant 80 : index
    %c0_30 = arith.constant 0 : index
    %44 = vector.load %arg4[%c80, %c0_30] : memref<92x128xbf16, #tpu.memory_space<vmem>>, vector<10x128xbf16>
    tpu.vector_store %arg4[%c80, %c0_30], %43 {strides = array<i32>} : memref<92x128xbf16, #tpu.memory_space<vmem>>, vector<10x128xbf16>,
    %cst = arith.constant 1.000000e+00 : bf16
    %45 = vector.broadcast %cst : bf16 to vector<2x128xbf16>
    %c90 = arith.constant 90 : index
    %c0_31 = arith.constant 0 : index
    %46 = vector.load %arg4[%c90, %c0_31] : memref<92x128xbf16, #tpu.memory_space<vmem>>, vector<2x128xbf16>
    tpu.vector_store %arg4[%c90, %c0_31], %45 {strides = array<i32>} : memref<92x128xbf16, #tpu.memory_space<vmem>>, vector<2x128xbf16>,
    %c0_32 = arith.constant 0 : index
    %c0_33 = arith.constant 0 : index
    %47 = vector.load %arg0[%c0_32, %c0_33] : memref<10x92xbf16, #tpu.memory_space<vmem>>, vector<10x92xbf16>
    %c0_34 = arith.constant 0 : index
    %c0_35 = arith.constant 0 : index
    %48 = vector.load %arg4[%c0_34, %c0_35] : memref<92x128xbf16, #tpu.memory_space<vmem>>, vector<92x128xbf16>
    %cst_36 = arith.constant dense<0.000000e+00> : vector<10x128xf32>
    %49 = tpu.matmul %47, %48, %cst_36 {dimension_numbers = #tpu.dot_dimension_numbers<[1], [0], [0], [1], [0, 0, 1, 1], [], []>} : vector<10x92xbf16>, vector<92x128xbf16>, vector<10x128xf32> -> vector<10x128xf32>
    %cst_37 = arith.constant 0.000000e+00 : f32
    %50 = vector.broadcast %cst_37 : f32 to vector<10x128xf32>
    %51 = arith.subf %50, %49 : vector<10x128xf32>
    %52 = math.exp %51 : vector<10x128xf32>
    %cst_38 = arith.constant 1.000000e+00 : f32
    %53 = vector.broadcast %cst_38 : f32 to vector<10x128xf32>
    %54 = arith.addf %53, %52 : vector<10x128xf32>
    %cst_39 = arith.constant 1.000000e+00 : f32
    %55 = vector.broadcast %cst_39 : f32 to vector<10x128xf32>
    %56 = arith.divf %55, %54 : vector<10x128xf32>
    %57 = arith.mulf %49, %56 : vector<10x128xf32>
    %58 = vector.extract_strided_slice %57 {offsets = [0, 0], sizes = [10, 110], strides = [1, 1]} : vector<10x128xf32> to vector<10x110xf32>
    %c0_40 = arith.constant 0 : index
    %c0_41 = arith.constant 0 : index
    %59 = vector.load %arg3[%c0_40, %c0_41] : memref<10x110xf32, #tpu.memory_space<vmem>>, vector<10x110xf32>
    tpu.vector_store %arg3[%c0_40, %c0_41], %58 {strides = array<i32>} : memref<10x110xf32, #tpu.memory_space<vmem>>, vector<10x110xf32>,
    return
  }
}

</mosaic_0001>

<llo_original>
// kernel: conv_transpose_silu.1
$region0: #{conv_transpose_silu.1}
  #allocation0 [shape = 'u32[]', space=smem, size = 0x4, offset = 0x4, fixed_abs, tag = 'smem constant byte address 0x4 - core index']
  #allocation1 [shape = 'u32[144,128]{1,0:T(1,128)}', space=vmem, size = 0x12000, scoped, tag = 'internal scratch']
  #allocation2 [shape = 'bf16[92,128]{1,0:T(8,128)(2,1)}', space=vmem, size = 0x6000, scoped, tag = 'scratch operand']
  %s0 = inlined_call_operand.vmem [shape: bf16[10,92], index: 0, kind: input, shape index: {}]
  %s1 = inlined_call_operand.vmem [shape: bf16[10,256], index: 1, kind: input, shape index: {}]
  %s2 = inlined_call_operand.vmem [shape: bf16[9,128], index: 2, kind: input, shape index: {}]
  %s3 = inlined_call_operand.vmem [shape: f32[10,110], index: 3, kind: output, shape index: {}]
  %s4 = sld [smem:[#allocation0]]
  $region22: #{conv_transpose_silu.1} parent=0
    _
  %s6 = ssub.s32 1, %s4
  %s7 = scalar_select 0, %s6, %s4
  // Predicated region
  $region2: #{conv_transpose_silu.1} parent=0 // pred_check
    _
  $region3: #{conv_transpose_silu.1} parent=0 // pred_check_branch
    %9 = sbr.rel (0) target = $region5
  $region4: #{conv_transpose_silu.1} parent=0 // pred_region
    _
  $region5: #{conv_transpose_silu.1} parent=0 // pred_fallthru
    _
  // Predicated region
  $region6: #{conv_transpose_silu.1} parent=0 // pred_check
    _
  $region7: #{conv_transpose_silu.1} parent=0 // pred_check_branch
    %11 = sbr.rel (0) target = $region9
  $region8: #{conv_transpose_silu.1} parent=0 // pred_region
    _
  $region9: #{conv_transpose_silu.1} parent=0 // pred_fallthru
    _
  // Predicated region
  $region10: #{conv_transpose_silu.1} parent=0 // pred_check
    _
  $region11: #{conv_transpose_silu.1} parent=0 // pred_check_branch
    %13 = sbr.rel (0) target = $region13
  $region12: #{conv_transpose_silu.1} parent=0 // pred_region
    _
  $region13: #{conv_transpose_silu.1} parent=0 // pred_fallthru
    _
  %v16 = vld [vmem:[%s1] sm:$0xff]
  %v17 = vld [vmem:[%s1 + $0x8] sm:$0x11]
  %v18 = vld [vmem:[%s2] sm:$0x1]
  %v20 = vpack.i.b16 %v18, %v18
  %v22 = vlaneseq
  %v23 = vshrl.u32 %v22, 7
  %v24 = vsub.s32 0, %v23
  %v25 = vrot.slane %v20, %v24
  %v27 = vunpack.c.l.b16 %v25
  %v28 = vpack.c.b16 %v27, %v27
  %29 = vrot.lane.b32.xlu0 %v28, 4
  %v30 = vpop.permute.xlu0 %29
  %v31 = vrot.slane %v30, 4
  %vm32 = vcmask 31744
  %v33 = vsel %vm32, %v31, %v30
  %v35 = vmul.bf16 %v16, %v33
  %v36 = vmul.bf16 %v17, %v33
  %39 = vrot.lane.b32.xlu0 %v35, 124
  %v40 = vpop.permute.xlu0 %39
  %41 = vrot.lane.b32.xlu0 %v36, 124
  %v42 = vpop.permute.xlu0 %41
  %v43 = vrot.slane %v40, 4
  %v44 = vrot.slane %v42, 4
  %vm45 = vcmask 1014784
  %v46 = vsel %vm45, %v40, %v43
  %v47 = vsel %vm45, %v42, %v44
  %50 = vst [vmem:[#allocation2] sm:$0xf] %v46
  %51 = vst [vmem:[#allocation2 + $0x4] sm:$0x1] %v47
  %v52 = vld [vmem:[%s1] sm:$0xff]
  %v53 = vld [vmem:[%s1 + $0x8] sm:$0x11]
  %v54 = vld [vmem:[%s2] sm:$0x1]
  %v56 = vshrl.u32 %v54, 16
  %v57 = vpack.i.b16 %v56, %v56
  %v59 = vlaneseq
  %v60 = vshrl.u32 %v59, 7
  %v61 = vsub.s32 0, %v60
  %v62 = vrot.slane %v57, %v61
  %v64 = vunpack.c.l.b16 %v62
  %v65 = vpack.c.b16 %v64, %v64
  %66 = vrot.lane.b32.xlu0 %v65, 5
  %v67 = vpop.permute.xlu0 %66
  %v68 = vrot.slane %v67, 4
  %vm69 = vcmask 39936
  %v70 = vsel %vm69, %v68, %v67
  %v72 = vmul.bf16 %v52, %v70
  %v73 = vmul.bf16 %v53, %v70
  %vm76 = vcmask 1040384
  %vm77 = vcmask 1044484
  %vm78 = vmor %vm76, %vm77
  %v79 = vrot.slane %v72, 7
  %v80 = vrot.slane %v79, 4
  %v81 = vrot.slane %v73, 7
  %v82 = vsel %vm78, %v80, %v81
  %83 = vrot.lane.b32.xlu0 %v79, 123
  %v84 = vpop.permute.xlu0 %83
  %85 = vrot.lane.b32.xlu0 %v82, 123
  %v86 = vpop.permute.xlu0 %85
  %v87 = vrot.slane %v84, 4
  %v88 = vrot.slane %v86, 4
  %vm89 = vcmask 1006592
  %v90 = vsel %vm89, %v84, %v87
  %v91 = vsel %vm89, %v86, %v88
  %94 = vst [vmem:[#allocation2 + $0x4] sm:$0xe] %v90
  %95 = vst [vmem:[#allocation2 + $0x8] sm:$0x3] %v91
  %v96 = vld [vmem:[%s1] sm:$0xff]
  %v97 = vld [vmem:[%s1 + $0x8] sm:$0x11]
  %v98 = vld [vmem:[%s2] sm:$0x2]
  %v100 = vpack.i.b16 %v98, %v98
  %v102 = vlaneseq
  %v103 = vshrl.u32 %v102, 7
  %v104 = vsub.s32 1, %v103
  %v105 = vrot.slane %v100, %v104
  %v107 = vunpack.c.l.b16 %v105
  %v108 = vpack.c.b16 %v107, %v107
  %109 = vrot.lane.b32.xlu0 %v108, 6
  %v110 = vpop.permute.xlu0 %109
  %v111 = vrot.slane %v110, 4
  %vm112 = vcmask 48128
  %v113 = vsel %vm112, %v111, %v110
  %v115 = vmul.bf16 %v96, %v113
  %v116 = vmul.bf16 %v97, %v113
  %vm119 = vcmask 1041408
  %vm120 = vcmask 1045508
  %vm121 = vmor %vm119, %vm120
  %v122 = vrot.slane %v115, 6
  %v123 = vrot.slane %v122, 4
  %v124 = vrot.slane %v116, 6
  %v125 = vsel %vm121, %v123, %v124
  %126 = vrot.lane.b32.xlu0 %v122, 122
  %v127 = vpop.permute.xlu0 %126
  %128 = vrot.lane.b32.xlu0 %v125, 122
  %v129 = vpop.permute.xlu0 %128
  %v130 = vrot.slane %v127, 4
  %v131 = vrot.slane %v129, 4
  %vm132 = vcmask 998400
  %v133 = vsel %vm132, %v127, %v130
  %v134 = vsel %vm132, %v129, %v131
  %137 = vst [vmem:[#allocation2 + $0x8] sm:$0xc] %v133
  %138 = vst [vmem:[#allocation2 + $0xc] sm:$0x7] %v134
  %v139 = vld [vmem:[%s1] sm:$0xff]
  %v140 = vld [vmem:[%s1 + $0x8] sm:$0x11]
  %v141 = vld [vmem:[%s2] sm:$0x2]
  %v143 = vshrl.u32 %v141, 16
  %v144 = vpack.i.b16 %v143, %v143
  %v146 = vlaneseq
  %v147 = vshrl.u32 %v146, 7
  %v148 = vsub.s32 1, %v147
  %v149 = vrot.slane %v144, %v148
  %v151 = vunpack.c.l.b16 %v149
  %v152 = vpack.c.b16 %v151, %v151
  %153 = vrot.lane.b32.xlu0 %v152, 15
  %v154 = vpop.permute.xlu0 %153
  %v155 = vrot.slane %v154, 4
  %vm156 = vcmask 121856
  %v157 = vsel %vm156, %v155, %v154
  %v159 = vmul.bf16 %v139, %v157
  %v160 = vmul.bf16 %v140, %v157
  %vm163 = vcmask 1042432
  %vm164 = vcmask 1046532
  %vm165 = vmor %vm163, %vm164
  %v166 = vrot.slane %v159, 5
  %v167 = vrot.slane %v166, 4
  %v168 = vrot.slane %v160, 5
  %v169 = vsel %vm165, %v167, %v168
  %170 = vrot.lane.b32.xlu0 %v166, 113
  %v171 = vpop.permute.xlu0 %170
  %172 = vrot.lane.b32.xlu0 %v169, 113
  %v173 = vpop.permute.xlu0 %172
  %v174 = vrot.slane %v171, 4
  %v175 = vrot.slane %v173, 4
  %vm176 = vcmask 924672
  %v177 = vsel %vm176, %v171, %v174
  %v178 = vsel %vm176, %v173, %v175
  %181 = vst [vmem:[#allocation2 + $0xc] sm:$0x8] %v177
  %182 = vst [vmem:[#allocation2 + $0x10] sm:$0xf] %v178
  %v183 = vld [vmem:[%s1] sm:$0xff]
  %v184 = vld [vmem:[%s1 + $0x8] sm:$0x11]
  %v185 = vld [vmem:[%s2] sm:$0x4]
  %v187 = vpack.i.b16 %v185, %v185
  %v189 = vlaneseq
  %v190 = vshrl.u32 %v189, 7
  %v191 = vsub.s32 2, %v190
  %v192 = vrot.slane %v187, %v191
  %v194 = vunpack.c.l.b16 %v192
  %v195 = vpack.c.b16 %v194, %v194
  %196 = vrot.lane.b32.xlu0 %v195, 16
  %v197 = vpop.permute.xlu0 %196
  %v198 = vrot.slane %v197, 4
  %vm199 = vcmask 130048
  %v200 = vsel %vm199, %v198, %v197
  %v202 = vmul.bf16 %v183, %v200
  %v203 = vmul.bf16 %v184, %v200
  %206 = vrot.lane.b32.xlu0 %v202, 112
  %v207 = vpop.permute.xlu0 %206
  %208 = vrot.lane.b32.xlu0 %v203, 112
  %v209 = vpop.permute.xlu0 %208
  %v210 = vrot.slane %v207, 4
  %v211 = vrot.slane %v209, 4
  %vm212 = vcmask 916480
  %v213 = vsel %vm212, %v207, %v210
  %v214 = vsel %vm212, %v209, %v211
  %217 = vst [vmem:[#allocation2 + $0x14] sm:$0xf] %v213
  %218 = vst [vmem:[#allocation2 + $0x18] sm:$0x1] %v214
  %v219 = vld [vmem:[%s1] sm:$0xff]
  %v220 = vld [vmem:[%s1 + $0x8] sm:$0x11]
  %v221 = vld [vmem:[%s2] sm:$0x4]
  %v223 = vshrl.u32 %v221, 16
  %v224 = vpack.i.b16 %v223, %v223
  %v226 = vlaneseq
  %v227 = vshrl.u32 %v226, 7
  %v228 = vsub.s32 2, %v227
  %v229 = vrot.slane %v224, %v228
  %v231 = vunpack.c.l.b16 %v229
  %v232 = vpack.c.b16 %v231, %v231
  %233 = vrot.lane.b32.xlu0 %v232, 17
  %v234 = vpop.permute.xlu0 %233
  %v235 = vrot.slane %v234, 4
  %vm236 = vcmask 138240
  %v237 = vsel %vm236, %v235, %v234
  %v239 = vmul.bf16 %v219, %v237
  %v240 = vmul.bf16 %v220, %v237
  %v243 = vrot.slane %v239, 7
  %v244 = vrot.slane %v243, 4
  %v245 = vrot.slane %v240, 7
  %v246 = vsel %vm78, %v244, %v245
  %247 = vrot.lane.b32.xlu0 %v243, 111
  %v248 = vpop.permute.xlu0 %247
  %249 = vrot.lane.b32.xlu0 %v246, 111
  %v250 = vpop.permute.xlu0 %249
  %v251 = vrot.slane %v248, 4
  %v252 = vrot.slane %v250, 4
  %vm253 = vcmask 908288
  %v254 = vsel %vm253, %v248, %v251
  %v255 = vsel %vm253, %v250, %v252
  %258 = vst [vmem:[#allocation2 + $0x18] sm:$0xe] %v254
  %259 = vst [vmem:[#allocation2 + $0x1c] sm:$0x3] %v255
  %v260 = vld [vmem:[%s1] sm:$0xff]
  %v261 = vld [vmem:[%s1 + $0x8] sm:$0x11]
  %v262 = vld [vmem:[%s2] sm:$0x8]
  %v264 = vpack.i.b16 %v262, %v262
  %v266 = vlaneseq
  %v267 = vshrl.u32 %v266, 7
  %v268 = vsub.s32 3, %v267
  %v269 = vrot.slane %v264, %v268
  %v271 = vunpack.c.l.b16 %v269
  %v272 = vpack.c.b16 %v271, %v271
  %273 = vrot.lane.b32.xlu0 %v272, 26
  %v274 = vpop.permute.xlu0 %273
  %v275 = vrot.slane %v274, 4
  %vm276 = vcmask 211968
  %v277 = vsel %vm276, %v275, %v274
  %v279 = vmul.bf16 %v260, %v277
  %v280 = vmul.bf16 %v261, %v277
  %v283 = vrot.slane %v279, 6
  %v284 = vrot.slane %v283, 4
  %v285 = vrot.slane %v280, 6
  %v286 = vsel %vm121, %v284, %v285
  %287 = vrot.lane.b32.xlu0 %v283, 102
  %v288 = vpop.permute.xlu0 %287
  %289 = vrot.lane.b32.xlu0 %v286, 102
  %v290 = vpop.permute.xlu0 %289
  %v291 = vrot.slane %v288, 4
  %v292 = vrot.slane %v290, 4
  %vm293 = vcmask 834560
  %v294 = vsel %vm293, %v288, %v291
  %v295 = vsel %vm293, %v290, %v292
  %298 = vst [vmem:[#allocation2 + $0x1c] sm:$0xc] %v294
  %299 = vst [vmem:[#allocation2 + $0x20] sm:$0x7] %v295
  %v300 = vld [vmem:[%s1] sm:$0xff]
  %v301 = vld [vmem:[%s1 + $0x8] sm:$0x11]
  %v302 = vld [vmem:[%s2] sm:$0x8]
  %v304 = vshrl.u32 %v302, 16
  %v305 = vpack.i.b16 %v304, %v304
  %v307 = vlaneseq
  %v308 = vshrl.u32 %v307, 7
  %v309 = vsub.s32 3, %v308
  %v310 = vrot.slane %v305, %v309
  %v312 = vunpack.c.l.b16 %v310
  %v313 = vpack.c.b16 %v312, %v312
  %314 = vrot.lane.b32.xlu0 %v313, 27
  %v315 = vpop.permute.xlu0 %314
  %v316 = vrot.slane %v315, 4
  %vm317 = vcmask 220160
  %v318 = vsel %vm317, %v316, %v315
  %v320 = vmul.bf16 %v300, %v318
  %v321 = vmul.bf16 %v301, %v318
  %v324 = vrot.slane %v320, 5
  %v325 = vrot.slane %v324, 4
  %v326 = vrot.slane %v321, 5
  %v327 = vsel %vm165, %v325, %v326
  %328 = vrot.lane.b32.xlu0 %v324, 101
  %v329 = vpop.permute.xlu0 %328
  %330 = vrot.lane.b32.xlu0 %v327, 101
  %v331 = vpop.permute.xlu0 %330
  %v332 = vrot.slane %v329, 4
  %v333 = vrot.slane %v331, 4
  %vm334 = vcmask 826368
  %v335 = vsel %vm334, %v329, %v332
  %v336 = vsel %vm334, %v331, %v333
  %339 = vst [vmem:[#allocation2 + $0x20] sm:$0x8] %v335
  %340 = vst [vmem:[#allocation2 + $0x24] sm:$0xf] %v336
  %v341 = vld [vmem:[%s1] sm:$0xff]
  %v342 = vld [vmem:[%s1 + $0x8] sm:$0x11]
  %v343 = vld [vmem:[%s2 + $0x4] sm:$0x1]
  %v345 = vpack.i.b16 %v343, %v343
  %v347 = vlaneseq
  %v348 = vshrl.u32 %v347, 7
  %v349 = vsub.s32 0, %v348
  %v350 = vrot.slane %v345, %v349
  %v352 = vunpack.c.l.b16 %v350
  %v353 = vpack.c.b16 %v352, %v352
  %354 = vrot.lane.b32.xlu0 %v353, 28
  %v355 = vpop.permute.xlu0 %354
  %v356 = vrot.slane %v355, 4
  %vm357 = vcmask 228352
  %v358 = vsel %vm357, %v356, %v355
  %v360 = vmul.bf16 %v341, %v358
  %v361 = vmul.bf16 %v342, %v358
  %364 = vrot.lane.b32.xlu0 %v360, 100
  %v365 = vpop.permute.xlu0 %364
  %366 = vrot.lane.b32.xlu0 %v361, 100
  %v367 = vpop.permute.xlu0 %366
  %v368 = vrot.slane %v365, 4
  %v369 = vrot.slane %v367, 4
  %vm370 = vcmask 818176
  %v371 = vsel %vm370, %v365, %v368
  %v372 = vsel %vm370, %v367, %v369
  %375 = vst [vmem:[#allocation2 + $0x28] sm:$0xf] %v371
  %376 = vst [vmem:[#allocation2 + $0x2c] sm:$0x1] %v372
  %377 = vst [vmem:[#allocation2 + $0x2c] sm:$0x2] 1065369472
  %v378 = vld [vmem:[%s0] sm:$0xf]
  %v379 = vld [vmem:[%s0 + $0x4] sm:$0x1]
  %v380 = vld [vmem:[#allocation2] sm:$0xf]
  %v381 = vld [vmem:[#allocation2 + $0x4] sm:$0xf]
  %v382 = vld [vmem:[#allocation2 + $0x8] sm:$0xf]
  %v383 = vld [vmem:[#allocation2 + $0xc] sm:$0xf]
  %v384 = vld [vmem:[#allocation2 + $0x10] sm:$0xf]
  %v385 = vld [vmem:[#allocation2 + $0x14] sm:$0xf]
  %v386 = vld [vmem:[#allocation2 + $0x18] sm:$0xf]
  %v387 = vld [vmem:[#allocation2 + $0x1c] sm:$0xf]
  %v388 = vld [vmem:[#allocation2 + $0x20] sm:$0xf]
  %v389 = vld [vmem:[#allocation2 + $0x24] sm:$0xf]
  %v390 = vld [vmem:[#allocation2 + $0x28] sm:$0xf]
  %v391 = vld [vmem:[#allocation2 + $0x2c] sm:$0x3]
  %v394 = vunpack.c.l.b16 %v378
  %v395 = vunpack.c.l.b16 %v379
  %v396 = vpack.c.b16 %v395, %v394
  %v409 = vunpack.c.l.b16 %v380
  %v410 = vunpack.c.l.b16 %v381
  %v411 = vunpack.c.l.b16 %v382
  %v412 = vunpack.c.l.b16 %v383
  %v413 = vunpack.c.l.b16 %v384
  %v414 = vunpack.c.l.b16 %v385
  %v415 = vunpack.c.l.b16 %v386
  %v416 = vunpack.c.l.b16 %v387
  %v417 = vunpack.c.l.b16 %v388
  %v418 = vunpack.c.l.b16 %v389
  %v419 = vunpack.c.l.b16 %v390
  %v420 = vunpack.c.l.b16 %v391
  %v421 = vpack.c.b16 %v410, %v409
  %v422 = vpack.c.b16 %v412, %v411
  %v423 = vpack.c.b16 %v414, %v413
  %v424 = vpack.c.b16 %v416, %v415
  %v425 = vpack.c.b16 %v418, %v417
  %v426 = vpack.c.b16 %v420, %v419
  %vm432 = vcmask 752640
  %v434 = vsel %vm432, %v396, 0
  %vm436 = vcmask 1045504
  %v438 = vsel %vm436, %v426, 0
  %440 = vmatprep.subr.bf16.mxu0 0
  %441 = vmatpush1.bf16.msra.mxu0 %v421
  %442 = vmatprep.subr.bf16.mxu0 0
  %443 = vmatpush1.bf16.msra.mxu0 %v422
  %444 = vmatprep.subr.bf16.mxu0 0
  %445 = vmatpush1.bf16.msra.mxu0 %v423
  %446 = vmatprep.subr.bf16.mxu0 0
  %447 = vmatpush1.bf16.msra.mxu0 %v424
  %448 = vmatprep.subr.bf16.mxu0 0
  %449 = vmatpush1.bf16.msra.mxu0 %v425
  %450 = vmatprep.subr.bf16.mxu0 0
  %451 = vmatpush1.bf16.msra.mxu0 %v438
  %452 = vmatprep.subr.bf16.mxu0 0
  %453 = vmatpush1.bf16.msra.mxu0 0
  %454 = vmatprep.subr.bf16.mxu0 0
  %455 = vmatpush1.bf16.msra.mxu0 0
  %456 = vmatprep.subr.bf16.mxu0 0
  %457 = vmatpush1.bf16.msra.mxu0 0
  %458 = vmatprep.subr.bf16.mxu0 0
  %459 = vmatpush1.bf16.msra.mxu0 0
  %460 = vmatprep.subr.bf16.mxu0 0
  %461 = vmatpush1.bf16.msra.mxu0 0
  %462 = vmatprep.subr.bf16.mxu0 0
  %463 = vmatpush1.bf16.msra.mxu0 0
  %464 = vmatprep.subr.bf16.mxu0 0
  %465 = vmatpush1.bf16.msra.mxu0 0
  %466 = vmatprep.subr.bf16.mxu0 0
  %467 = vmatpush1.bf16.msra.mxu0 0
  %468 = vmatprep.subr.bf16.mxu0 0
  %469 = vmatpush1.bf16.msra.mxu0 0
  %470 = vmatprep.subr.bf16.mxu0 0
  %471 = vmatpush1.bf16.msra.mxu0 0
  %472 = vmatprep.mubr.bf16.mxu0 0
  %473 = vmatmul.mubr.bf16.gmra.mrb[0].mxu0 %v434
  %v474 = vpop.f32.mrb[0].mxu0
  %v475 = vadd.f32 0.0, %v474
  %v476 = vpop.f32.mrb[0].mxu0
  %v477 = vpop.f32.mrb[0].mxu0
  %v478 = vadd.f32 0.0, %v477
  %v479 = vpop.f32.mrb[0].mxu0
  %480 = vdwg.mxu0
  %v481 = vsub.f32 0.0, %v475
  %v482 = vsub.f32 0.0, %v478
  %v483 = vmul.f32 %v481, 1.442695
  %v484 = vpow.pop %v483
  %v485 = vmul.f32 %v482, 1.442695
  %v486 = vpow.pop %v485
  %v487 = vadd.f32 %v484, 1.0
  %v488 = vadd.f32 %v486, 1.0
  %v489 = vrcp.pop %v487
  %v490 = vmul.f32 1.0, %v489
  %v491 = vrcp.pop %v488
  %v492 = vmul.f32 1.0, %v491
  %v493 = vmul.f32 %v475, %v490
  %v494 = vmul.f32 %v478, %v492
  %vm495 = vcmask 900096
  %496 = vst.msk [vmem:[%s3] sm:$0xff] %vm495, %v493
  %vm497 = vcmask 893952
  %498 = vst.msk [vmem:[%s3 + $0x8] sm:$0x3] %vm497, %v494
  // Predicated region
  $region14: #{conv_transpose_silu.1} parent=0 // pred_check
    _
  $region15: #{conv_transpose_silu.1} parent=0 // pred_check_branch
    %500 = sbr.rel (0) target = $region17
  $region16: #{conv_transpose_silu.1} parent=0 // pred_region
    _
  $region17: #{conv_transpose_silu.1} parent=0 // pred_fallthru
    _
  // Predicated region
  $region18: #{conv_transpose_silu.1} parent=0 // pred_check
    _
  $region19: #{conv_transpose_silu.1} parent=0 // pred_check_branch
    %502 = sbr.rel (0) target = $region21
  $region20: #{conv_transpose_silu.1} parent=0 // pred_region
    _
  $region21: #{conv_transpose_silu.1} parent=0 // pred_fallthru
    _

</llo_original>
